<compile_context>
chip_gen: v7x
topology: tpu7x:2x2x1
jax: 0.10.0
libtpu: 0.0.40
codegen_flags: <defaults>
</compile_context>

<pallas_src>
import jax
import jax.numpy as jnp
import numpy as np
from jax.experimental import pallas as pl
from jax.experimental.pallas import tpu as pltpu

# ---------------- model dims ----------------
N_NODES = 32      # total nodes in the batch
DIM_FEATURES = 16
HIDDEN = 32       # hidden_units[0] == all hidden dims
DIM_TARGET = 8
N_GRAPHS = 4
N_EDGES = 64
NO_LAYERS = 4     # len([H] + hidden_units) with hidden_units=[32,32,32]
POOL_PAD = 16     # pool rows padded to a bf16 sublane tile (>= N_GRAPHS)


# ---------------- fused Pallas kernel (no grid, straight line) ----------------
def gin_fused_kernel(x_ref, s_ref, w_ref, b_ref, lw_ref, ob_ref, out_ref):
    """Whole 4-layer GIN forward.

    x_ref   [N, H]      bf16  node features (feature dim zero-padded 16->32)
    s_ref   [N+16, N]   bf16  S = [adj + (1+eps)*I ; pool padded to 16 rows]
    w_ref   [8H, H]     bf16  MLP weights (BN folded); layer l: w1 @ rows 64l..64l+32,
                              w2 @ rows 64l+32..64l+64 (layer-0 w1 row-padded)
    b_ref   [8, H]      f32   MLP biases: rows 0..3 = b1_l, rows 4..7 = b2_l
    lw_ref  [4H, T]     bf16  stacked per-layer readout (linears[l]) weights
    ob_ref  [G, T]      f32   folded readout bias: counts*lb0 + lb1 + lb2 + lb3
    out_ref [G, T]      f32
    """
    S = s_ref[...]            # [48, 32] bf16 — reused MXU operand every layer
    B = b_ref[...]            # [8, 32]  f32

    def mlp(z_bf16, l):
        # Linear -> BN(folded) -> ReLU -> Linear -> BN(folded) -> ReLU
        w1 = w_ref[64 * l:64 * l + 32, :]
        w2 = w_ref[64 * l + 32:64 * l + 64, :]
        b1 = B[l:l + 1, :]
        b2 = B[4 + l:5 + l, :]
        h = jnp.maximum(
            jnp.dot(z_bf16, w1, preferred_element_type=jnp.float32) + b1, 0.0)
        return jnp.maximum(
            jnp.dot(h.astype(jnp.bfloat16), w2,
                    preferred_element_type=jnp.float32) + b2, 0.0)

    pooled = []
    z = x_ref[...]            # layer-0 input, already bf16
    for l in range(NO_LAYERS):
        xc = mlp(z, l)                                         # [N, H] f32
        # fused aggregation + pooling in one matmul:
        #   rows 0..31  -> (1+eps)*x_i + sum_{j->i} x_j   (next layer's GINConv input)
        #   rows 32..47 -> global_add_pool(x)              (padded graphs are zero rows)
        sx = jnp.dot(S, xc.astype(jnp.bfloat16),
                     preferred_element_type=jnp.float32)       # [N+16, H] f32
        pooled.append(sx[N_NODES:, :])                         # [16, H]
        if l + 1 < NO_LAYERS:
            z = sx[:N_NODES, :].astype(jnp.bfloat16)

    # Deferred readout: sum_l pooled_l @ lw_l == concat_lanes(pooled) @ stack_rows(lw).
    pooled_cat = jnp.concatenate(pooled, axis=1)               # [16, 4H] f32
    final = jnp.dot(pooled_cat.astype(jnp.bfloat16), lw_ref[...],
                    preferred_element_type=jnp.float32)        # [16, T]
    # F.dropout(p=0.0) is identity; biases were folded host-side into ob_ref.
    out_ref[...] = final[:N_GRAPHS, :] + ob_ref[...]


# ---------------- forward wrapper: host-side packing + one pallas_call ----------------
def gin_forward(x, adj, pool, params):
    f32 = jnp.float32

    # train_eps=False -> every GINConv eps is the static 0.0 init; fold (1+eps)*I once.
    eps = float(params["eps"][0]) if params["eps"] else 0.0
    adjI = adj + (1.0 + eps) * jnp.eye(N_NODES, dtype=f32)

    # S = [adjI ; pool padded to 16 rows].  Entries are small integers / 0/1 -> exact bf16.
    pool_pad = jnp.zeros((POOL_PAD, N_NODES), f32).at[:N_GRAPHS, :].set(pool)
    s_slab = jnp.concatenate([adjI, pool_pad], axis=0).astype(jnp.bfloat16)    # [48, 32]

    # Node features: pad feature dim 16 -> 32 so every layer's MLP has one shape.
    x_pad = jnp.zeros((N_NODES, HIDDEN), f32).at[:, :DIM_FEATURES].set(x)
    x_pad = x_pad.astype(jnp.bfloat16)                                         # [32, 32]

    # MLP weight / bias slabs (BN already folded into the Linears).
    w1_0, b1_0, w2_0, b2_0 = params["first_h"]
    w1_0p = jnp.zeros((HIDDEN, HIDDEN), f32).at[:DIM_FEATURES, :].set(w1_0)
    w_list, b1_list, b2_list = [w1_0p, w2_0], [b1_0], [b2_0]
    for l in range(1, NO_LAYERS):
        w1, b1, w2, b2 = params["mlp"][l - 1]
        w_list += [w1, w2]
        b1_list.append(b1)
        b2_list.append(b2)
    w_slab = jnp.concatenate(w_list, axis=0).astype(jnp.bfloat16)              # [256, 32]
    b_slab = jnp.concatenate(b1_list + b2_list, axis=0).astype(f32)            # [8, 32]

    # Stacked readout weights and fully folded readout bias
    # (pool(lin0(x)) == (pool@x)@lw0 + counts*lb0, valid for 0/1 sum pooling).
    lw_slab = jnp.concatenate([params["lin"][l][0] for l in range(NO_LAYERS)],
                              axis=0).astype(jnp.bfloat16)                     # [128, 8]
    counts = jnp.sum(pool, axis=1, keepdims=True)                              # [G, 1]
    out_bias = counts * params["lin"][0][1]
    for l in range(1, NO_LAYERS):
        out_bias = out_bias + params["lin"][l][1]
    out_bias = out_bias.astype(f32)                                            # [G, T]

    vmem = pl.BlockSpec(memory_space=pltpu.MemorySpace.VMEM)   # whole array resident in VMEM
    return pl.pallas_call(
        gin_fused_kernel,
        out_shape=jax.ShapeDtypeStruct((N_GRAPHS, DIM_TARGET), f32),
        in_specs=[vmem] * 6,
        out_specs=vmem,
    )(x_pad, s_slab, w_slab, b_slab, lw_slab, out_bias)


# ---------------- parameter construction (glue) ----------------
def _linear(key, d_in, d_out):
    kw, kb = jax.random.split(key)
    w = jax.random.normal(kw, (d_in, d_out), jnp.float32) / np.sqrt(d_in)
    b = 0.1 * jax.random.normal(kb, (1, d_out), jnp.float32)
    return w, b


def _bn_params(key, d):
    kg, kb, km, kv = jax.random.split(key, 4)
    gamma = 1.0 + 0.1 * jax.random.normal(kg, (d,), jnp.float32)
    beta = 0.1 * jax.random.normal(kb, (d,), jnp.float32)
    mean = 0.1 * jax.random.normal(km, (d,), jnp.float32)
    var = 1.0 + 0.1 * jax.random.uniform(kv, (d,), jnp.float32)
    return gamma, beta, mean, var


def _fold_bn(w, b, gamma, beta, mean, var, bn_eps=1e-5):
    scale = gamma / jnp.sqrt(var + bn_eps)
    return w * scale[None, :], (b - mean[None, :]) * scale[None, :] + beta[None, :]


def _mlp_block(key, d_in, d_out):
    """Linear->BN->ReLU->Linear->BN->ReLU with BN folded (eval mode)."""
    k1, k2, k3, k4 = jax.random.split(key, 4)
    w1, b1 = _fold_bn(*_linear(k1, d_in, d_out), *_bn_params(k2, d_out))
    w2, b2 = _fold_bn(*_linear(k3, d_out, d_out), *_bn_params(k4, d_out))
    return w1, b1, w2, b2


def init_params(key):
    keys = jax.random.split(key, 2 * NO_LAYERS + 1)
    params = {
        "first_h": _mlp_block(keys[0], DIM_FEATURES, HIDDEN),
        "mlp": [],
        "lin": [_linear(keys[1], HIDDEN, DIM_TARGET)],
        "eps": [],
    }
    for l in range(1, NO_LAYERS):
        params["mlp"].append(_mlp_block(keys[2 * l], HIDDEN, HIDDEN))
        params["lin"].append(_linear(keys[2 * l + 1], HIDDEN, DIM_TARGET))
        params["eps"].append(0.0)  # train_eps=False -> eps init 0, fixed
    return params


# ---------------- pure-JAX reference (faithful module math, f32 matmuls) ----------------
def _dot_hi(a, b):
    return jnp.dot(a, b, precision=jax.lax.Precision.HIGHEST)


def gin_forward_ref(x, adj, pool, params):
    def mlp(z, w1, b1, w2, b2):
        h = jnp.maximum(_dot_hi(z, w1) + b1, 0.0)
        return jnp.maximum(_dot_hi(h, w2) + b2, 0.0)

    xc = mlp(x, *params["first_h"])
    lw, lb = params["lin"][0]
    out = _dot_hi(pool, _dot_hi(xc, lw) + lb)                  # pool(linears[0](x))
    for l in range(1, NO_LAYERS):
        agg = (1.0 + params["eps"][l - 1]) * xc + _dot_hi(adj, xc)
        xc = mlp(agg, *params["mlp"][l - 1])
        lw, lb = params["lin"][l]
        out = out + _dot_hi(_dot_hi(pool, xc), lw) + lb        # linears[l](pool(x))
    return out


if __name__ == "__main__":
    key = jax.random.PRNGKey(0)
    kx, ke1, ke2, kb, kp = jax.random.split(key, 5)

    # synthetic batched graph: N_NODES nodes, N_EDGES edges, N_GRAPHS graphs
    x = jax.random.normal(kx, (N_NODES, DIM_FEATURES), jnp.float32)
    src = jax.random.randint(ke1, (N_EDGES,), 0, N_NODES)
    dst = jax.random.randint(ke2, (N_EDGES,), 0, N_NODES)
    batch = jnp.sort(jax.random.randint(kb, (N_NODES,), 0, N_GRAPHS))

    # densify graph structure (glue): adj[i, j] = #edges j -> i ; pool[g, n] = [batch[n]==g]
    adj = jnp.zeros((N_NODES, N_NODES), jnp.float32).at[dst, src].add(1.0)
    pool = (batch[None, :] == jnp.arange(N_GRAPHS)[:, None]).astype(jnp.float32)

    params = init_params(kp)

    out = gin_forward(x, adj, pool, params)
    jax.block_until_ready(out)

    # Reference keeps f32 matmuls at HIGHEST precision; the kernel uses bf16 operands
    # with f32 accumulation (identical rounding class to TPU default precision), so
    # budget ~2% of the output scale across the 9-matmul chain.  The adj+(1+eps)I fold,
    # layer-0 bias count-fold and deferred-readout reassociation are exact refactorings.
    ref = np.asarray(jax.block_until_ready(gin_forward_ref(x, adj, pool, params)))
    tol = 2e-2 * max(1.0, float(np.max(np.abs(ref))))
    np.testing.assert_allclose(np.asarray(out), ref, rtol=2e-2, atol=tol)

    print("KERNEL_OK")
</pallas_src>

<mosaic_0001>
module attributes {stable_mosaic.version = 11 : i64} {
  func.func @gin_fused_kernel(%arg0: memref<32x32xbf16, #tpu.memory_space<vmem>>, %arg1: memref<48x32xbf16, #tpu.memory_space<vmem>>, %arg2: memref<256x32xbf16, #tpu.memory_space<vmem>>, %arg3: memref<8x32xf32, #tpu.memory_space<vmem>>, %arg4: memref<128x8xbf16, #tpu.memory_space<vmem>>, %arg5: memref<4x8xf32, #tpu.memory_space<vmem>>, %arg6: memref<4x8xf32, #tpu.memory_space<vmem>>) attributes {dimension_semantics = [], scalar_prefetch = 0 : i64, scratch_operands = 0 : i64, tpu.core_type = #tpu.core_type<tc>} {
    %c0 = arith.constant 0 : index
    %c0_0 = arith.constant 0 : index
    %0 = vector.load %arg1[%c0, %c0_0] : memref<48x32xbf16, #tpu.memory_space<vmem>>, vector<48x32xbf16>
    %c0_1 = arith.constant 0 : index
    %c0_2 = arith.constant 0 : index
    %1 = vector.load %arg3[%c0_1, %c0_2] : memref<8x32xf32, #tpu.memory_space<vmem>>, vector<8x32xf32>
    %c0_3 = arith.constant 0 : index
    %c0_4 = arith.constant 0 : index
    %2 = vector.load %arg0[%c0_3, %c0_4] : memref<32x32xbf16, #tpu.memory_space<vmem>>, vector<32x32xbf16>
    %c0_5 = arith.constant 0 : index
    %c0_6 = arith.constant 0 : index
    %3 = vector.load %arg2[%c0_5, %c0_6] : memref<256x32xbf16, #tpu.memory_space<vmem>>, vector<32x32xbf16>
    %c32 = arith.constant 32 : index
    %c0_7 = arith.constant 0 : index
    %4 = vector.load %arg2[%c32, %c0_7] : memref<256x32xbf16, #tpu.memory_space<vmem>>, vector<32x32xbf16>
    %5 = vector.extract_strided_slice %1 {offsets = [0, 0], sizes = [1, 32], strides = [1, 1]} : vector<8x32xf32> to vector<1x32xf32>
    %6 = vector.extract_strided_slice %1 {offsets = [4, 0], sizes = [1, 32], strides = [1, 1]} : vector<8x32xf32> to vector<1x32xf32>
    %cst = arith.constant dense<0.000000e+00> : vector<32x32xf32>
    %7 = tpu.matmul %2, %3, %cst {dimension_numbers = #tpu.dot_dimension_numbers<[1], [0], [0], [1], [0, 0, 1, 1], [], []>} : vector<32x32xbf16>, vector<32x32xbf16>, vector<32x32xf32> -> vector<32x32xf32>
    %8 = vector.broadcast %5 : vector<1x32xf32> to vector<32x32xf32>
    %9 = arith.addf %7, %8 : vector<32x32xf32>
    %cst_8 = arith.constant 0.000000e+00 : f32
    %10 = vector.broadcast %cst_8 : f32 to vector<32x32xf32>
    %11 = arith.maximumf %9, %10 : vector<32x32xf32>
    %12 = arith.truncf %11 : vector<32x32xf32> to vector<32x32xbf16>
    %cst_9 = arith.constant dense<0.000000e+00> : vector<32x32xf32>
    %13 = tpu.matmul %12, %4, %cst_9 {dimension_numbers = #tpu.dot_dimension_numbers<[1], [0], [0], [1], [0, 0, 1, 1], [], []>} : vector<32x32xbf16>, vector<32x32xbf16>, vector<32x32xf32> -> vector<32x32xf32>
    %14 = vector.broadcast %6 : vector<1x32xf32> to vector<32x32xf32>
    %15 = arith.addf %13, %14 : vector<32x32xf32>
    %cst_10 = arith.constant 0.000000e+00 : f32
    %16 = vector.broadcast %cst_10 : f32 to vector<32x32xf32>
    %17 = arith.maximumf %15, %16 : vector<32x32xf32>
    %18 = arith.truncf %17 : vector<32x32xf32> to vector<32x32xbf16>
    %cst_11 = arith.constant dense<0.000000e+00> : vector<48x32xf32>
    %19 = tpu.matmul %0, %18, %cst_11 {dimension_numbers = #tpu.dot_dimension_numbers<[1], [0], [0], [1], [0, 0, 1, 1], [], []>} : vector<48x32xbf16>, vector<32x32xbf16>, vector<48x32xf32> -> vector<48x32xf32>
    %20 = vector.extract_strided_slice %19 {offsets = [32, 0], sizes = [16, 32], strides = [1, 1]} : vector<48x32xf32> to vector<16x32xf32>
    %21 = vector.extract_strided_slice %19 {offsets = [0, 0], sizes = [32, 32], strides = [1, 1]} : vector<48x32xf32> to vector<32x32xf32>
    %22 = arith.truncf %21 : vector<32x32xf32> to vector<32x32xbf16>
    %c64 = arith.constant 64 : index
    %c0_12 = arith.constant 0 : index
    %23 = vector.load %arg2[%c64, %c0_12] : memref<256x32xbf16, #tpu.memory_space<vmem>>, vector<32x32xbf16>
    %c96 = arith.constant 96 : index
    %c0_13 = arith.constant 0 : index
    %24 = vector.load %arg2[%c96, %c0_13] : memref<256x32xbf16, #tpu.memory_space<vmem>>, vector<32x32xbf16>
    %25 = vector.extract_strided_slice %1 {offsets = [1, 0], sizes = [1, 32], strides = [1, 1]} : vector<8x32xf32> to vector<1x32xf32>
    %26 = vector.extract_strided_slice %1 {offsets = [5, 0], sizes = [1, 32], strides = [1, 1]} : vector<8x32xf32> to vector<1x32xf32>
    %cst_14 = arith.constant dense<0.000000e+00> : vector<32x32xf32>
    %27 = tpu.matmul %22, %23, %cst_14 {dimension_numbers = #tpu.dot_dimension_numbers<[1], [0], [0], [1], [0, 0, 1, 1], [], []>} : vector<32x32xbf16>, vector<32x32xbf16>, vector<32x32xf32> -> vector<32x32xf32>
    %28 = vector.broadcast %25 : vector<1x32xf32> to vector<32x32xf32>
    %29 = arith.addf %27, %28 : vector<32x32xf32>
    %cst_15 = arith.constant 0.000000e+00 : f32
    %30 = vector.broadcast %cst_15 : f32 to vector<32x32xf32>
    %31 = arith.maximumf %29, %30 : vector<32x32xf32>
    %32 = arith.truncf %31 : vector<32x32xf32> to vector<32x32xbf16>
    %cst_16 = arith.constant dense<0.000000e+00> : vector<32x32xf32>
    %33 = tpu.matmul %32, %24, %cst_16 {dimension_numbers = #tpu.dot_dimension_numbers<[1], [0], [0], [1], [0, 0, 1, 1], [], []>} : vector<32x32xbf16>, vector<32x32xbf16>, vector<32x32xf32> -> vector<32x32xf32>
    %34 = vector.broadcast %26 : vector<1x32xf32> to vector<32x32xf32>
    %35 = arith.addf %33, %34 : vector<32x32xf32>
    %cst_17 = arith.constant 0.000000e+00 : f32
    %36 = vector.broadcast %cst_17 : f32 to vector<32x32xf32>
    %37 = arith.maximumf %35, %36 : vector<32x32xf32>
    %38 = arith.truncf %37 : vector<32x32xf32> to vector<32x32xbf16>
    %cst_18 = arith.constant dense<0.000000e+00> : vector<48x32xf32>
    %39 = tpu.matmul %0, %38, %cst_18 {dimension_numbers = #tpu.dot_dimension_numbers<[1], [0], [0], [1], [0, 0, 1, 1], [], []>} : vector<48x32xbf16>, vector<32x32xbf16>, vector<48x32xf32> -> vector<48x32xf32>
    %40 = vector.extract_strided_slice %39 {offsets = [32, 0], sizes = [16, 32], strides = [1, 1]} : vector<48x32xf32> to vector<16x32xf32>
    %41 = vector.extract_strided_slice %39 {offsets = [0, 0], sizes = [32, 32], strides = [1, 1]} : vector<48x32xf32> to vector<32x32xf32>
    %42 = arith.truncf %41 : vector<32x32xf32> to vector<32x32xbf16>
    %c128 = arith.constant 128 : index
    %c0_19 = arith.constant 0 : index
    %43 = vector.load %arg2[%c128, %c0_19] : memref<256x32xbf16, #tpu.memory_space<vmem>>, vector<32x32xbf16>
    %c160 = arith.constant 160 : index
    %c0_20 = arith.constant 0 : index
    %44 = vector.load %arg2[%c160, %c0_20] : memref<256x32xbf16, #tpu.memory_space<vmem>>, vector<32x32xbf16>
    %45 = vector.extract_strided_slice %1 {offsets = [2, 0], sizes = [1, 32], strides = [1, 1]} : vector<8x32xf32> to vector<1x32xf32>
    %46 = vector.extract_strided_slice %1 {offsets = [6, 0], sizes = [1, 32], strides = [1, 1]} : vector<8x32xf32> to vector<1x32xf32>
    %cst_21 = arith.constant dense<0.000000e+00> : vector<32x32xf32>
    %47 = tpu.matmul %42, %43, %cst_21 {dimension_numbers = #tpu.dot_dimension_numbers<[1], [0], [0], [1], [0, 0, 1, 1], [], []>} : vector<32x32xbf16>, vector<32x32xbf16>, vector<32x32xf32> -> vector<32x32xf32>
    %48 = vector.broadcast %45 : vector<1x32xf32> to vector<32x32xf32>
    %49 = arith.addf %47, %48 : vector<32x32xf32>
    %cst_22 = arith.constant 0.000000e+00 : f32
    %50 = vector.broadcast %cst_22 : f32 to vector<32x32xf32>
    %51 = arith.maximumf %49, %50 : vector<32x32xf32>
    %52 = arith.truncf %51 : vector<32x32xf32> to vector<32x32xbf16>
    %cst_23 = arith.constant dense<0.000000e+00> : vector<32x32xf32>
    %53 = tpu.matmul %52, %44, %cst_23 {dimension_numbers = #tpu.dot_dimension_numbers<[1], [0], [0], [1], [0, 0, 1, 1], [], []>} : vector<32x32xbf16>, vector<32x32xbf16>, vector<32x32xf32> -> vector<32x32xf32>
    %54 = vector.broadcast %46 : vector<1x32xf32> to vector<32x32xf32>
    %55 = arith.addf %53, %54 : vector<32x32xf32>
    %cst_24 = arith.constant 0.000000e+00 : f32
    %56 = vector.broadcast %cst_24 : f32 to vector<32x32xf32>
    %57 = arith.maximumf %55, %56 : vector<32x32xf32>
    %58 = arith.truncf %57 : vector<32x32xf32> to vector<32x32xbf16>
    %cst_25 = arith.constant dense<0.000000e+00> : vector<48x32xf32>
    %59 = tpu.matmul %0, %58, %cst_25 {dimension_numbers = #tpu.dot_dimension_numbers<[1], [0], [0], [1], [0, 0, 1, 1], [], []>} : vector<48x32xbf16>, vector<32x32xbf16>, vector<48x32xf32> -> vector<48x32xf32>
    %60 = vector.extract_strided_slice %59 {offsets = [32, 0], sizes = [16, 32], strides = [1, 1]} : vector<48x32xf32> to vector<16x32xf32>
    %61 = vector.extract_strided_slice %59 {offsets = [0, 0], sizes = [32, 32], strides = [1, 1]} : vector<48x32xf32> to vector<32x32xf32>
    %62 = arith.truncf %61 : vector<32x32xf32> to vector<32x32xbf16>
    %c192 = arith.constant 192 : index
    %c0_26 = arith.constant 0 : index
    %63 = vector.load %arg2[%c192, %c0_26] : memref<256x32xbf16, #tpu.memory_space<vmem>>, vector<32x32xbf16>
    %c224 = arith.constant 224 : index
    %c0_27 = arith.constant 0 : index
    %64 = vector.load %arg2[%c224, %c0_27] : memref<256x32xbf16, #tpu.memory_space<vmem>>, vector<32x32xbf16>
    %65 = vector.extract_strided_slice %1 {offsets = [3, 0], sizes = [1, 32], strides = [1, 1]} : vector<8x32xf32> to vector<1x32xf32>
    %66 = vector.extract_strided_slice %1 {offsets = [7, 0], sizes = [1, 32], strides = [1, 1]} : vector<8x32xf32> to vector<1x32xf32>
    %cst_28 = arith.constant dense<0.000000e+00> : vector<32x32xf32>
    %67 = tpu.matmul %62, %63, %cst_28 {dimension_numbers = #tpu.dot_dimension_numbers<[1], [0], [0], [1], [0, 0, 1, 1], [], []>} : vector<32x32xbf16>, vector<32x32xbf16>, vector<32x32xf32> -> vector<32x32xf32>
    %68 = vector.broadcast %65 : vector<1x32xf32> to vector<32x32xf32>
    %69 = arith.addf %67, %68 : vector<32x32xf32>
    %cst_29 = arith.constant 0.000000e+00 : f32
    %70 = vector.broadcast %cst_29 : f32 to vector<32x32xf32>
    %71 = arith.maximumf %69, %70 : vector<32x32xf32>
    %72 = arith.truncf %71 : vector<32x32xf32> to vector<32x32xbf16>
    %cst_30 = arith.constant dense<0.000000e+00> : vector<32x32xf32>
    %73 = tpu.matmul %72, %64, %cst_30 {dimension_numbers = #tpu.dot_dimension_numbers<[1], [0], [0], [1], [0, 0, 1, 1], [], []>} : vector<32x32xbf16>, vector<32x32xbf16>, vector<32x32xf32> -> vector<32x32xf32>
    %74 = vector.broadcast %66 : vector<1x32xf32> to vector<32x32xf32>
    %75 = arith.addf %73, %74 : vector<32x32xf32>
    %cst_31 = arith.constant 0.000000e+00 : f32
    %76 = vector.broadcast %cst_31 : f32 to vector<32x32xf32>
    %77 = arith.maximumf %75, %76 : vector<32x32xf32>
    %78 = arith.truncf %77 : vector<32x32xf32> to vector<32x32xbf16>
    %cst_32 = arith.constant dense<0.000000e+00> : vector<48x32xf32>
    %79 = tpu.matmul %0, %78, %cst_32 {dimension_numbers = #tpu.dot_dimension_numbers<[1], [0], [0], [1], [0, 0, 1, 1], [], []>} : vector<48x32xbf16>, vector<32x32xbf16>, vector<48x32xf32> -> vector<48x32xf32>
    %80 = vector.extract_strided_slice %79 {offsets = [32, 0], sizes = [16, 32], strides = [1, 1]} : vector<48x32xf32> to vector<16x32xf32>
    %81 = tpu.concatenate %20, %40, %60, %80 in 1 : vector<16x32xf32>, vector<16x32xf32>, vector<16x32xf32>, vector<16x32xf32> -> vector<16x128xf32>
    %82 = arith.truncf %81 : vector<16x128xf32> to vector<16x128xbf16>
    %c0_33 = arith.constant 0 : index
    %c0_34 = arith.constant 0 : index
    %83 = vector.load %arg4[%c0_33, %c0_34] : memref<128x8xbf16, #tpu.memory_space<vmem>>, vector<128x8xbf16>
    %cst_35 = arith.constant dense<0.000000e+00> : vector<16x8xf32>
    %84 = tpu.matmul %82, %83, %cst_35 {dimension_numbers = #tpu.dot_dimension_numbers<[1], [0], [0], [1], [0, 0, 1, 1], [], []>} : vector<16x128xbf16>, vector<128x8xbf16>, vector<16x8xf32> -> vector<16x8xf32>
    %85 = vector.extract_strided_slice %84 {offsets = [0, 0], sizes = [4, 8], strides = [1, 1]} : vector<16x8xf32> to vector<4x8xf32>
    %c0_36 = arith.constant 0 : index
    %c0_37 = arith.constant 0 : index
    %86 = vector.load %arg5[%c0_36, %c0_37] : memref<4x8xf32, #tpu.memory_space<vmem>>, vector<4x8xf32>
    %87 = arith.addf %85, %86 : vector<4x8xf32>
    %c0_38 = arith.constant 0 : index
    %c0_39 = arith.constant 0 : index
    %88 = vector.load %arg6[%c0_38, %c0_39] : memref<4x8xf32, #tpu.memory_space<vmem>>, vector<4x8xf32>
    tpu.vector_store %arg6[%c0_38, %c0_39], %87 {strides = array<i32>} : memref<4x8xf32, #tpu.memory_space<vmem>>, vector<4x8xf32>,
    return
  }
}

</mosaic_0001>

<llo_original>
// kernel: tpu_custom_call.1
$region0: #{tpu_custom_call.1}
  #allocation0 [shape = 'u32[]', space=smem, size = 0x4, offset = 0x4, fixed_abs, tag = 'smem constant byte address 0x4 - core index']
  #allocation1 [shape = 'u32[144,128]{1,0:T(1,128)}', space=vmem, size = 0x12000, scoped, tag = 'internal scratch']
  %s0 = inlined_call_operand.vmem [shape: bf16[32,32], index: 0, kind: input, shape index: {}]
  %s1 = inlined_call_operand.vmem [shape: bf16[48,32], index: 1, kind: input, shape index: {}]
  %s2 = inlined_call_operand.vmem [shape: bf16[256,32], index: 2, kind: input, shape index: {}]
  %s3 = inlined_call_operand.vmem [shape: f32[8,32], index: 3, kind: input, shape index: {}]
  %s4 = inlined_call_operand.vmem [shape: bf16[128,8], index: 4, kind: input, shape index: {}]
  %s5 = inlined_call_operand.vmem [shape: f32[4,8], index: 5, kind: input, shape index: {}]
  %s6 = inlined_call_operand.hbm [shape: f32[4,8], index: 6, kind: output, shape index: {}]
  %s7 = sld [smem:[#allocation0]]
  $region34: #{tpu_custom_call.1} parent=0
    _
  %s9 = ssub.s32 1, %s7
  %s10 = scalar_select 0, %s9, %s7
  $region1: #{tpu_custom_call.1} parent=0
    #allocation2 [shape = 'u8[2048]{0}', space=vmem, size = 0x800, scoped, tag = 'output window, operand 0, single buffered']
    #allocation3 [shape = 's32[1]{0}', space=sflag, size = 0x4, scoped, tag = 'scoped memory for tpu_custom_call.1']
    %11 = vsyncpa [#allocation3], 0
    // Predicated region
    $region2: #{tpu_custom_call.1} parent=1 // pred_check
      _
    $region3: #{tpu_custom_call.1} parent=1 // pred_check_branch
      %13 = sbr.rel (0) target = $region5
    $region4: #{tpu_custom_call.1} parent=1 // pred_region
      _
    $region5: #{tpu_custom_call.1} parent=1 // pred_fallthru
      _
    // Predicated region
    $region6: #{tpu_custom_call.1} parent=1 // pred_check
      _
    $region7: #{tpu_custom_call.1} parent=1 // pred_check_branch
      %15 = sbr.rel (0) target = $region9
    $region8: #{tpu_custom_call.1} parent=1 // pred_region
      _
    $region9: #{tpu_custom_call.1} parent=1 // pred_fallthru
      _
    // Predicated region
    $region10: #{tpu_custom_call.1} parent=1 // pred_check
      _
    $region11: #{tpu_custom_call.1} parent=1 // pred_check_branch
      %17 = sbr.rel (0) target = $region13
    $region12: #{tpu_custom_call.1} parent=1 // pred_region
      _
    $region13: #{tpu_custom_call.1} parent=1 // pred_fallthru
      _
    // Predicated region
    $region14: #{tpu_custom_call.1} parent=1 // pred_check
      _
    $region15: #{tpu_custom_call.1} parent=1 // pred_check_branch
      %19 = sbr.rel (0) target = $region17
    $region16: #{tpu_custom_call.1} parent=1 // pred_region
      _
    $region17: #{tpu_custom_call.1} parent=1 // pred_fallthru
      _
    // Predicated region
    $region18: #{tpu_custom_call.1} parent=1 // pred_check
      _
    $region19: #{tpu_custom_call.1} parent=1 // pred_check_branch
      %21 = sbr.rel (0) target = $region21
    $region20: #{tpu_custom_call.1} parent=1 // pred_region
      _
    $region21: #{tpu_custom_call.1} parent=1 // pred_fallthru
      _
    // Predicated region
    $region22: #{tpu_custom_call.1} parent=1 // pred_check
      _
    $region23: #{tpu_custom_call.1} parent=1 // pred_check_branch
      %23 = sbr.rel (0) target = $region25
    $region24: #{tpu_custom_call.1} parent=1 // pred_region
      _
    $region25: #{tpu_custom_call.1} parent=1 // pred_fallthru
      _
    %v25 = vld [vmem:[%s1] sm:$0xf]
    %v26 = vld [vmem:[%s1 + $0x4] sm:$0xf]
    %v27 = vld [vmem:[%s1 + $0x8] sm:$0xf]
    %v28 = vld [vmem:[%s1 + $0xc] sm:$0xf]
    %v29 = vld [vmem:[%s1 + $0x10] sm:$0xf]
    %v30 = vld [vmem:[%s1 + $0x14] sm:$0xf]
    %v31 = vld [vmem:[%s3] sm:$0xff]
    %v32 = vld [vmem:[%s0] sm:$0xf]
    %v33 = vld [vmem:[%s0 + $0x4] sm:$0xf]
    %v34 = vld [vmem:[%s0 + $0x8] sm:$0xf]
    %v35 = vld [vmem:[%s0 + $0xc] sm:$0xf]
    %v36 = vld [vmem:[%s2] sm:$0xf]
    %v37 = vld [vmem:[%s2 + $0x4] sm:$0xf]
    %v38 = vld [vmem:[%s2 + $0x8] sm:$0xf]
    %v39 = vld [vmem:[%s2 + $0xc] sm:$0xf]
    %v40 = vld [vmem:[%s2 + $0x10] sm:$0xf]
    %v41 = vld [vmem:[%s2 + $0x14] sm:$0xf]
    %v42 = vld [vmem:[%s2 + $0x18] sm:$0xf]
    %v43 = vld [vmem:[%s2 + $0x1c] sm:$0xf]
    %v44 = vlaneseq
    %v45 = vshrl.u32 %v44, 7
    %v46 = vsub.s32 0, %v45
    %v47 = vrot.slane %v31, %v46
    %v52 = vunpack.c.l.b16 %v32
    %v53 = vunpack.c.l.b16 %v33
    %v54 = vunpack.c.l.b16 %v34
    %v55 = vunpack.c.l.b16 %v35
    %v56 = vpack.c.b16 %v53, %v52
    %v57 = vpack.c.b16 %v55, %v54
    %v62 = vunpack.c.l.b16 %v36
    %v63 = vunpack.c.l.b16 %v37
    %v64 = vunpack.c.l.b16 %v38
    %v65 = vunpack.c.l.b16 %v39
    %v66 = vpack.c.b16 %v63, %v62
    %v67 = vpack.c.b16 %v65, %v64
    %vm70 = vcmask 261120
    %v72 = vsel %vm70, %v56, 0
    %v75 = vsel %vm70, %v57, 0
    %77 = vmatprep.subr.bf16.mxu0 0
    %78 = vmatpush1.bf16.msra.mxu0 %v66
    %79 = vmatprep.subr.bf16.mxu0 0
    %80 = vmatpush1.bf16.msra.mxu0 %v67
    %81 = vmatprep.subr.bf16.mxu0 0
    %82 = vmatpush1.bf16.msra.mxu0 0
    %83 = vmatprep.subr.bf16.mxu0 0
    %84 = vmatpush1.bf16.msra.mxu0 0
    %85 = vmatprep.subr.bf16.mxu0 0
    %86 = vmatpush1.bf16.msra.mxu0 0
    %87 = vmatprep.subr.bf16.mxu0 0
    %88 = vmatpush1.bf16.msra.mxu0 0
    %89 = vmatprep.subr.bf16.mxu0 0
    %90 = vmatpush1.bf16.msra.mxu0 0
    %91 = vmatprep.subr.bf16.mxu0 0
    %92 = vmatpush1.bf16.msra.mxu0 0
    %93 = vmatprep.subr.bf16.mxu0 0
    %94 = vmatpush1.bf16.msra.mxu0 0
    %95 = vmatprep.subr.bf16.mxu0 0
    %96 = vmatpush1.bf16.msra.mxu0 0
    %97 = vmatprep.subr.bf16.mxu0 0
    %98 = vmatpush1.bf16.msra.mxu0 0
    %99 = vmatprep.subr.bf16.mxu0 0
    %100 = vmatpush1.bf16.msra.mxu0 0
    %101 = vmatprep.subr.bf16.mxu0 0
    %102 = vmatpush1.bf16.msra.mxu0 0
    %103 = vmatprep.subr.bf16.mxu0 0
    %104 = vmatpush1.bf16.msra.mxu0 0
    %105 = vmatprep.subr.bf16.mxu0 0
    %106 = vmatpush1.bf16.msra.mxu0 0
    %107 = vmatprep.subr.bf16.mxu0 0
    %108 = vmatpush1.bf16.msra.mxu0 0
    %109 = vmatprep.mubr.bf16.mxu0 0
    %110 = vmatmul.mubr.bf16.gmra.mrb[0].mxu0 %v72
    %v111 = vpop.f32.mrb[0].mxu0
    %v112 = vadd.f32 %v47, %v111
    %v113 = vpop.f32.mrb[0].mxu0
    %v114 = vpop.f32.mrb[0].mxu0
    %v115 = vadd.f32 %v47, %v114
    %v116 = vpop.f32.mrb[0].mxu0
    %117 = vmatprep.mubr.bf16.mxu0 0
    %118 = vmatmul.mubr.bf16.gmra.mrb[0].mxu0 %v75
    %v119 = vpop.f32.mrb[0].mxu0
    %v120 = vadd.f32 %v47, %v119
    %v121 = vpop.f32.mrb[0].mxu0
    %v122 = vpop.f32.mrb[0].mxu0
    %v123 = vadd.f32 %v47, %v122
    %v124 = vpop.f32.mrb[0].mxu0
    %125 = vdwg.mxu0
    %v126 = vmax.f32 %v112, 0.0
    %v127 = vmax.f32 %v115, 0.0
    %v128 = vmax.f32 %v120, 0.0
    %v129 = vmax.f32 %v123, 0.0
    %v130 = vpack.c.bf16 %v127, %v126
    %v131 = vpack.c.bf16 %v129, %v128
    %v132 = vlaneseq
    %v133 = vshrl.u32 %v132, 7
    %v134 = vsub.s32 4, %v133
    %v135 = vrot.slane %v31, %v134
    %v140 = vunpack.c.l.b16 %v40
    %v141 = vunpack.c.l.b16 %v41
    %v142 = vunpack.c.l.b16 %v42
    %v143 = vunpack.c.l.b16 %v43
    %v144 = vpack.c.b16 %v141, %v140
    %v145 = vpack.c.b16 %v143, %v142
    %v149 = vsel %vm70, %v130, 0
    %v152 = vsel %vm70, %v131, 0
    %154 = vmatprep.subr.bf16.mxu0 0
    %155 = vmatpush1.bf16.msra.mxu0 %v144
    %156 = vmatprep.subr.bf16.mxu0 0
    %157 = vmatpush1.bf16.msra.mxu0 %v145
    %158 = vmatprep.subr.bf16.mxu0 0
    %159 = vmatpush1.bf16.msra.mxu0 0
    %160 = vmatprep.subr.bf16.mxu0 0
    %161 = vmatpush1.bf16.msra.mxu0 0
    %162 = vmatprep.subr.bf16.mxu0 0
    %163 = vmatpush1.bf16.msra.mxu0 0
    %164 = vmatprep.subr.bf16.mxu0 0
    %165 = vmatpush1.bf16.msra.mxu0 0
    %166 = vmatprep.subr.bf16.mxu0 0
    %167 = vmatpush1.bf16.msra.mxu0 0
    %168 = vmatprep.subr.bf16.mxu0 0
    %169 = vmatpush1.bf16.msra.mxu0 0
    %170 = vmatprep.subr.bf16.mxu0 0
    %171 = vmatpush1.bf16.msra.mxu0 0
    %172 = vmatprep.subr.bf16.mxu0 0
    %173 = vmatpush1.bf16.msra.mxu0 0
    %174 = vmatprep.subr.bf16.mxu0 0
    %175 = vmatpush1.bf16.msra.mxu0 0
    %176 = vmatprep.subr.bf16.mxu0 0
    %177 = vmatpush1.bf16.msra.mxu0 0
    %178 = vmatprep.subr.bf16.mxu0 0
    %179 = vmatpush1.bf16.msra.mxu0 0
    %180 = vmatprep.subr.bf16.mxu0 0
    %181 = vmatpush1.bf16.msra.mxu0 0
    %182 = vmatprep.subr.bf16.mxu0 0
    %183 = vmatpush1.bf16.msra.mxu0 0
    %184 = vmatprep.subr.bf16.mxu0 0
    %185 = vmatpush1.bf16.msra.mxu0 0
    %186 = vmatprep.mubr.bf16.mxu0 0
    %187 = vmatmul.mubr.bf16.gmra.mrb[0].mxu0 %v149
    %v188 = vpop.f32.mrb[0].mxu0
    %v189 = vadd.f32 %v135, %v188
    %v190 = vpop.f32.mrb[0].mxu0
    %v191 = vpop.f32.mrb[0].mxu0
    %v192 = vadd.f32 %v135, %v191
    %v193 = vpop.f32.mrb[0].mxu0
    %194 = vmatprep.mubr.bf16.mxu0 0
    %195 = vmatmul.mubr.bf16.gmra.mrb[0].mxu0 %v152
    %v196 = vpop.f32.mrb[0].mxu0
    %v197 = vadd.f32 %v135, %v196
    %v198 = vpop.f32.mrb[0].mxu0
    %v199 = vpop.f32.mrb[0].mxu0
    %v200 = vadd.f32 %v135, %v199
    %v201 = vpop.f32.mrb[0].mxu0
    %202 = vdwg.mxu0
    %v203 = vmax.f32 %v189, 0.0
    %v204 = vmax.f32 %v192, 0.0
    %v205 = vmax.f32 %v197, 0.0
    %v206 = vmax.f32 %v200, 0.0
    %v207 = vpack.c.bf16 %v204, %v203
    %v208 = vpack.c.bf16 %v206, %v205
    %v215 = vunpack.c.l.b16 %v25
    %v216 = vunpack.c.l.b16 %v26
    %v217 = vunpack.c.l.b16 %v27
    %v218 = vunpack.c.l.b16 %v28
    %v219 = vunpack.c.l.b16 %v29
    %v220 = vunpack.c.l.b16 %v30
    %v221 = vpack.c.b16 %v216, %v215
    %v222 = vpack.c.b16 %v218, %v217
    %v223 = vpack.c.b16 %v220, %v219
    %v225 = vsel %vm70, %v221, 0
    %v228 = vsel %vm70, %v222, 0
    %v231 = vsel %vm70, %v223, 0
    %233 = vmatprep.subr.bf16.mxu0 0
    %234 = vmatpush1.bf16.msra.mxu0 %v207
    %235 = vmatprep.subr.bf16.mxu0 0
    %236 = vmatpush1.bf16.msra.mxu0 %v208
    %237 = vmatprep.subr.bf16.mxu0 0
    %238 = vmatpush1.bf16.msra.mxu0 0
    %239 = vmatprep.subr.bf16.mxu0 0
    %240 = vmatpush1.bf16.msra.mxu0 0
    %241 = vmatprep.subr.bf16.mxu0 0
    %242 = vmatpush1.bf16.msra.mxu0 0
    %243 = vmatprep.subr.bf16.mxu0 0
    %244 = vmatpush1.bf16.msra.mxu0 0
    %245 = vmatprep.subr.bf16.mxu0 0
    %246 = vmatpush1.bf16.msra.mxu0 0
    %247 = vmatprep.subr.bf16.mxu0 0
    %248 = vmatpush1.bf16.msra.mxu0 0
    %249 = vmatprep.subr.bf16.mxu0 0
    %250 = vmatpush1.bf16.msra.mxu0 0
    %251 = vmatprep.subr.bf16.mxu0 0
    %252 = vmatpush1.bf16.msra.mxu0 0
    %253 = vmatprep.subr.bf16.mxu0 0
    %254 = vmatpush1.bf16.msra.mxu0 0
    %255 = vmatprep.subr.bf16.mxu0 0
    %256 = vmatpush1.bf16.msra.mxu0 0
    %257 = vmatprep.subr.bf16.mxu0 0
    %258 = vmatpush1.bf16.msra.mxu0 0
    %259 = vmatprep.subr.bf16.mxu0 0
    %260 = vmatpush1.bf16.msra.mxu0 0
    %261 = vmatprep.subr.bf16.mxu0 0
    %262 = vmatpush1.bf16.msra.mxu0 0
    %263 = vmatprep.subr.bf16.mxu0 0
    %264 = vmatpush1.bf16.msra.mxu0 0
    %265 = vmatprep.mubr.bf16.mxu0 0
    %266 = vmatmul.mubr.bf16.gmra.mrb[0].mxu0 %v225
    %v267 = vpop.f32.mrb[0].mxu0
    %v268 = vadd.f32 0.0, %v267
    %v269 = vpop.f32.mrb[0].mxu0
    %v270 = vpop.f32.mrb[0].mxu0
    %v271 = vadd.f32 0.0, %v270
    %v272 = vpop.f32.mrb[0].mxu0
    %273 = vmatprep.mubr.bf16.mxu0 0
    %274 = vmatmul.mubr.bf16.gmra.mrb[0].mxu0 %v228
    %v275 = vpop.f32.mrb[0].mxu0
    %v276 = vadd.f32 0.0, %v275
    %v277 = vpop.f32.mrb[0].mxu0
    %v278 = vpop.f32.mrb[0].mxu0
    %v279 = vadd.f32 0.0, %v278
    %v280 = vpop.f32.mrb[0].mxu0
    %281 = vmatprep.mubr.bf16.mxu0 0
    %282 = vmatmul.mubr.bf16.gmra.mrb[0].mxu0 %v231
    %v283 = vpop.f32.mrb[0].mxu0
    %v284 = vadd.f32 0.0, %v283
    %v285 = vpop.f32.mrb[0].mxu0
    %v286 = vpop.f32.mrb[0].mxu0
    %v287 = vadd.f32 0.0, %v286
    %v288 = vpop.f32.mrb[0].mxu0
    %289 = vdwg.mxu0
    %v290 = vpack.c.bf16 %v271, %v268
    %v291 = vpack.c.bf16 %v279, %v276
    %v292 = vld [vmem:[%s2 + $0x20] sm:$0xf]
    %v293 = vld [vmem:[%s2 + $0x24] sm:$0xf]
    %v294 = vld [vmem:[%s2 + $0x28] sm:$0xf]
    %v295 = vld [vmem:[%s2 + $0x2c] sm:$0xf]
    %v296 = vld [vmem:[%s2 + $0x30] sm:$0xf]
    %v297 = vld [vmem:[%s2 + $0x34] sm:$0xf]
    %v298 = vld [vmem:[%s2 + $0x38] sm:$0xf]
    %v299 = vld [vmem:[%s2 + $0x3c] sm:$0xf]
    %v300 = vlaneseq
    %v301 = vshrl.u32 %v300, 7
    %v302 = vsub.s32 1, %v301
    %v303 = vrot.slane %v31, %v302
    %v308 = vunpack.c.l.b16 %v292
    %v309 = vunpack.c.l.b16 %v293
    %v310 = vunpack.c.l.b16 %v294
    %v311 = vunpack.c.l.b16 %v295
    %v312 = vpack.c.b16 %v309, %v308
    %v313 = vpack.c.b16 %v311, %v310
    %v317 = vsel %vm70, %v290, 0
    %v320 = vsel %vm70, %v291, 0
    %322 = vmatprep.subr.bf16.mxu0 0
    %323 = vmatpush1.bf16.msra.mxu0 %v312
    %324 = vmatprep.subr.bf16.mxu0 0
    %325 = vmatpush1.bf16.msra.mxu0 %v313
    %326 = vmatprep.subr.bf16.mxu0 0
    %327 = vmatpush1.bf16.msra.mxu0 0
    %328 = vmatprep.subr.bf16.mxu0 0
    %329 = vmatpush1.bf16.msra.mxu0 0
    %330 = vmatprep.subr.bf16.mxu0 0
    %331 = vmatpush1.bf16.msra.mxu0 0
    %332 = vmatprep.subr.bf16.mxu0 0
    %333 = vmatpush1.bf16.msra.mxu0 0
    %334 = vmatprep.subr.bf16.mxu0 0
    %335 = vmatpush1.bf16.msra.mxu0 0
    %336 = vmatprep.subr.bf16.mxu0 0
    %337 = vmatpush1.bf16.msra.mxu0 0
    %338 = vmatprep.subr.bf16.mxu0 0
    %339 = vmatpush1.bf16.msra.mxu0 0
    %340 = vmatprep.subr.bf16.mxu0 0
    %341 = vmatpush1.bf16.msra.mxu0 0
    %342 = vmatprep.subr.bf16.mxu0 0
    %343 = vmatpush1.bf16.msra.mxu0 0
    %344 = vmatprep.subr.bf16.mxu0 0
    %345 = vmatpush1.bf16.msra.mxu0 0
    %346 = vmatprep.subr.bf16.mxu0 0
    %347 = vmatpush1.bf16.msra.mxu0 0
    %348 = vmatprep.subr.bf16.mxu0 0
    %349 = vmatpush1.bf16.msra.mxu0 0
    %350 = vmatprep.subr.bf16.mxu0 0
    %351 = vmatpush1.bf16.msra.mxu0 0
    %352 = vmatprep.subr.bf16.mxu0 0
    %353 = vmatpush1.bf16.msra.mxu0 0
    %354 = vmatprep.mubr.bf16.mxu0 0
    %355 = vmatmul.mubr.bf16.gmra.mrb[0].mxu0 %v317
    %v356 = vpop.f32.mrb[0].mxu0
    %v357 = vadd.f32 %v303, %v356
    %v358 = vpop.f32.mrb[0].mxu0
    %v359 = vpop.f32.mrb[0].mxu0
    %v360 = vadd.f32 %v303, %v359
    %v361 = vpop.f32.mrb[0].mxu0
    %362 = vmatprep.mubr.bf16.mxu0 0
    %363 = vmatmul.mubr.bf16.gmra.mrb[0].mxu0 %v320
    %v364 = vpop.f32.mrb[0].mxu0
    %v365 = vadd.f32 %v303, %v364
    %v366 = vpop.f32.mrb[0].mxu0
    %v367 = vpop.f32.mrb[0].mxu0
    %v368 = vadd.f32 %v303, %v367
    %v369 = vpop.f32.mrb[0].mxu0
    %370 = vdwg.mxu0
    %v371 = vmax.f32 %v357, 0.0
    %v372 = vmax.f32 %v360, 0.0
    %v373 = vmax.f32 %v365, 0.0
    %v374 = vmax.f32 %v368, 0.0
    %v375 = vpack.c.bf16 %v372, %v371
    %v376 = vpack.c.bf16 %v374, %v373
    %v377 = vlaneseq
    %v378 = vshrl.u32 %v377, 7
    %v379 = vsub.s32 5, %v378
    %v380 = vrot.slane %v31, %v379
    %v385 = vunpack.c.l.b16 %v296
    %v386 = vunpack.c.l.b16 %v297
    %v387 = vunpack.c.l.b16 %v298
    %v388 = vunpack.c.l.b16 %v299
    %v389 = vpack.c.b16 %v386, %v385
    %v390 = vpack.c.b16 %v388, %v387
    %v394 = vsel %vm70, %v375, 0
    %v397 = vsel %vm70, %v376, 0
    %399 = vmatprep.subr.bf16.mxu0 0
    %400 = vmatpush1.bf16.msra.mxu0 %v389
    %401 = vmatprep.subr.bf16.mxu0 0
    %402 = vmatpush1.bf16.msra.mxu0 %v390
    %403 = vmatprep.subr.bf16.mxu0 0
    %404 = vmatpush1.bf16.msra.mxu0 0
    %405 = vmatprep.subr.bf16.mxu0 0
    %406 = vmatpush1.bf16.msra.mxu0 0
    %407 = vmatprep.subr.bf16.mxu0 0
    %408 = vmatpush1.bf16.msra.mxu0 0
    %409 = vmatprep.subr.bf16.mxu0 0
    %410 = vmatpush1.bf16.msra.mxu0 0
    %411 = vmatprep.subr.bf16.mxu0 0
    %412 = vmatpush1.bf16.msra.mxu0 0
    %413 = vmatprep.subr.bf16.mxu0 0
    %414 = vmatpush1.bf16.msra.mxu0 0
    %415 = vmatprep.subr.bf16.mxu0 0
    %416 = vmatpush1.bf16.msra.mxu0 0
    %417 = vmatprep.subr.bf16.mxu0 0
    %418 = vmatpush1.bf16.msra.mxu0 0
    %419 = vmatprep.subr.bf16.mxu0 0
    %420 = vmatpush1.bf16.msra.mxu0 0
    %421 = vmatprep.subr.bf16.mxu0 0
    %422 = vmatpush1.bf16.msra.mxu0 0
    %423 = vmatprep.subr.bf16.mxu0 0
    %424 = vmatpush1.bf16.msra.mxu0 0
    %425 = vmatprep.subr.bf16.mxu0 0
    %426 = vmatpush1.bf16.msra.mxu0 0
    %427 = vmatprep.subr.bf16.mxu0 0
    %428 = vmatpush1.bf16.msra.mxu0 0
    %429 = vmatprep.subr.bf16.mxu0 0
    %430 = vmatpush1.bf16.msra.mxu0 0
    %431 = vmatprep.mubr.bf16.mxu0 0
    %432 = vmatmul.mubr.bf16.gmra.mrb[0].mxu0 %v394
    %v433 = vpop.f32.mrb[0].mxu0
    %v434 = vadd.f32 %v380, %v433
    %v435 = vpop.f32.mrb[0].mxu0
    %v436 = vpop.f32.mrb[0].mxu0
    %v437 = vadd.f32 %v380, %v436
    %v438 = vpop.f32.mrb[0].mxu0
    %439 = vmatprep.mubr.bf16.mxu0 0
    %440 = vmatmul.mubr.bf16.gmra.mrb[0].mxu0 %v397
    %v441 = vpop.f32.mrb[0].mxu0
    %v442 = vadd.f32 %v380, %v441
    %v443 = vpop.f32.mrb[0].mxu0
    %v444 = vpop.f32.mrb[0].mxu0
    %v445 = vadd.f32 %v380, %v444
    %v446 = vpop.f32.mrb[0].mxu0
    %447 = vdwg.mxu0
    %v448 = vmax.f32 %v434, 0.0
    %v449 = vmax.f32 %v437, 0.0
    %v450 = vmax.f32 %v442, 0.0
    %v451 = vmax.f32 %v445, 0.0
    %v452 = vpack.c.bf16 %v449, %v448
    %v453 = vpack.c.bf16 %v451, %v450
    %454 = vmatprep.subr.bf16.mxu0 0
    %455 = vmatpush1.bf16.msra.mxu0 %v452
    %456 = vmatprep.subr.bf16.mxu0 0
    %457 = vmatpush1.bf16.msra.mxu0 %v453
    %458 = vmatprep.subr.bf16.mxu0 0
    %459 = vmatpush1.bf16.msra.mxu0 0
    %460 = vmatprep.subr.bf16.mxu0 0
    %461 = vmatpush1.bf16.msra.mxu0 0
    %462 = vmatprep.subr.bf16.mxu0 0
    %463 = vmatpush1.bf16.msra.mxu0 0
    %464 = vmatprep.subr.bf16.mxu0 0
    %465 = vmatpush1.bf16.msra.mxu0 0
    %466 = vmatprep.subr.bf16.mxu0 0
    %467 = vmatpush1.bf16.msra.mxu0 0
    %468 = vmatprep.subr.bf16.mxu0 0
    %469 = vmatpush1.bf16.msra.mxu0 0
    %470 = vmatprep.subr.bf16.mxu0 0
    %471 = vmatpush1.bf16.msra.mxu0 0
    %472 = vmatprep.subr.bf16.mxu0 0
    %473 = vmatpush1.bf16.msra.mxu0 0
    %474 = vmatprep.subr.bf16.mxu0 0
    %475 = vmatpush1.bf16.msra.mxu0 0
    %476 = vmatprep.subr.bf16.mxu0 0
    %477 = vmatpush1.bf16.msra.mxu0 0
    %478 = vmatprep.subr.bf16.mxu0 0
    %479 = vmatpush1.bf16.msra.mxu0 0
    %480 = vmatprep.subr.bf16.mxu0 0
    %481 = vmatpush1.bf16.msra.mxu0 0
    %482 = vmatprep.subr.bf16.mxu0 0
    %483 = vmatpush1.bf16.msra.mxu0 0
    %484 = vmatprep.subr.bf16.mxu0 0
    %485 = vmatpush1.bf16.msra.mxu0 0
    %486 = vmatprep.mubr.bf16.mxu0 0
    %487 = vmatmul.mubr.bf16.gmra.mrb[0].mxu0 %v225
    %v488 = vpop.f32.mrb[0].mxu0
    %v489 = vadd.f32 0.0, %v488
    %v490 = vpop.f32.mrb[0].mxu0
    %v491 = vpop.f32.mrb[0].mxu0
    %v492 = vadd.f32 0.0, %v491
    %v493 = vpop.f32.mrb[0].mxu0
    %494 = vmatprep.mubr.bf16.mxu0 0
    %495 = vmatmul.mubr.bf16.gmra.mrb[0].mxu0 %v228
    %v496 = vpop.f32.mrb[0].mxu0
    %v497 = vadd.f32 0.0, %v496
    %v498 = vpop.f32.mrb[0].mxu0
    %v499 = vpop.f32.mrb[0].mxu0
    %v500 = vadd.f32 0.0, %v499
    %v501 = vpop.f32.mrb[0].mxu0
    %502 = vmatprep.mubr.bf16.mxu0 0
    %503 = vmatmul.mubr.bf16.gmra.mrb[0].mxu0 %v231
    %v504 = vpop.f32.mrb[0].mxu0
    %v505 = vadd.f32 0.0, %v504
    %v506 = vpop.f32.mrb[0].mxu0
    %v507 = vpop.f32.mrb[0].mxu0
    %v508 = vadd.f32 0.0, %v507
    %v509 = vpop.f32.mrb[0].mxu0
    %510 = vdwg.mxu0
    %v511 = vpack.c.bf16 %v492, %v489
    %v512 = vpack.c.bf16 %v500, %v497
    %v513 = vld [vmem:[%s2 + $0x40] sm:$0xf]
    %v514 = vld [vmem:[%s2 + $0x44] sm:$0xf]
    %v515 = vld [vmem:[%s2 + $0x48] sm:$0xf]
    %v516 = vld [vmem:[%s2 + $0x4c] sm:$0xf]
    %v517 = vld [vmem:[%s2 + $0x50] sm:$0xf]
    %v518 = vld [vmem:[%s2 + $0x54] sm:$0xf]
    %v519 = vld [vmem:[%s2 + $0x58] sm:$0xf]
    %v520 = vld [vmem:[%s2 + $0x5c] sm:$0xf]
    %v521 = vlaneseq
    %v522 = vshrl.u32 %v521, 7
    %v523 = vsub.s32 2, %v522
    %v524 = vrot.slane %v31, %v523
    %v529 = vunpack.c.l.b16 %v513
    %v530 = vunpack.c.l.b16 %v514
    %v531 = vunpack.c.l.b16 %v515
    %v532 = vunpack.c.l.b16 %v516
    %v533 = vpack.c.b16 %v530, %v529
    %v534 = vpack.c.b16 %v532, %v531
    %v538 = vsel %vm70, %v511, 0
    %v541 = vsel %vm70, %v512, 0
    %543 = vmatprep.subr.bf16.mxu0 0
    %544 = vmatpush1.bf16.msra.mxu0 %v533
    %545 = vmatprep.subr.bf16.mxu0 0
    %546 = vmatpush1.bf16.msra.mxu0 %v534
    %547 = vmatprep.subr.bf16.mxu0 0
    %548 = vmatpush1.bf16.msra.mxu0 0
    %549 = vmatprep.subr.bf16.mxu0 0
    %550 = vmatpush1.bf16.msra.mxu0 0
    %551 = vmatprep.subr.bf16.mxu0 0
    %552 = vmatpush1.bf16.msra.mxu0 0
    %553 = vmatprep.subr.bf16.mxu0 0
    %554 = vmatpush1.bf16.msra.mxu0 0
    %555 = vmatprep.subr.bf16.mxu0 0
    %556 = vmatpush1.bf16.msra.mxu0 0
    %557 = vmatprep.subr.bf16.mxu0 0
    %558 = vmatpush1.bf16.msra.mxu0 0
    %559 = vmatprep.subr.bf16.mxu0 0
    %560 = vmatpush1.bf16.msra.mxu0 0
    %561 = vmatprep.subr.bf16.mxu0 0
    %562 = vmatpush1.bf16.msra.mxu0 0
    %563 = vmatprep.subr.bf16.mxu0 0
    %564 = vmatpush1.bf16.msra.mxu0 0
    %565 = vmatprep.subr.bf16.mxu0 0
    %566 = vmatpush1.bf16.msra.mxu0 0
    %567 = vmatprep.subr.bf16.mxu0 0
    %568 = vmatpush1.bf16.msra.mxu0 0
    %569 = vmatprep.subr.bf16.mxu0 0
    %570 = vmatpush1.bf16.msra.mxu0 0
    %571 = vmatprep.subr.bf16.mxu0 0
    %572 = vmatpush1.bf16.msra.mxu0 0
    %573 = vmatprep.subr.bf16.mxu0 0
    %574 = vmatpush1.bf16.msra.mxu0 0
    %575 = vmatprep.mubr.bf16.mxu0 0
    %576 = vmatmul.mubr.bf16.gmra.mrb[0].mxu0 %v538
    %v577 = vpop.f32.mrb[0].mxu0
    %v578 = vadd.f32 %v524, %v577
    %v579 = vpop.f32.mrb[0].mxu0
    %v580 = vpop.f32.mrb[0].mxu0
    %v581 = vadd.f32 %v524, %v580
    %v582 = vpop.f32.mrb[0].mxu0
    %583 = vmatprep.mubr.bf16.mxu0 0
    %584 = vmatmul.mubr.bf16.gmra.mrb[0].mxu0 %v541
    %v585 = vpop.f32.mrb[0].mxu0
    %v586 = vadd.f32 %v524, %v585
    %v587 = vpop.f32.mrb[0].mxu0
    %v588 = vpop.f32.mrb[0].mxu0
    %v589 = vadd.f32 %v524, %v588
    %v590 = vpop.f32.mrb[0].mxu0
    %591 = vdwg.mxu0
    %v592 = vmax.f32 %v578, 0.0
    %v593 = vmax.f32 %v581, 0.0
    %v594 = vmax.f32 %v586, 0.0
    %v595 = vmax.f32 %v589, 0.0
    %v596 = vpack.c.bf16 %v593, %v592
    %v597 = vpack.c.bf16 %v595, %v594
    %v598 = vlaneseq
    %v599 = vshrl.u32 %v598, 7
    %v600 = vsub.s32 6, %v599
    %v601 = vrot.slane %v31, %v600
    %v606 = vunpack.c.l.b16 %v517
    %v607 = vunpack.c.l.b16 %v518
    %v608 = vunpack.c.l.b16 %v519
    %v609 = vunpack.c.l.b16 %v520
    %v610 = vpack.c.b16 %v607, %v606
    %v611 = vpack.c.b16 %v609, %v608
    %v615 = vsel %vm70, %v596, 0
    %v618 = vsel %vm70, %v597, 0
    %620 = vmatprep.subr.bf16.mxu0 0
    %621 = vmatpush1.bf16.msra.mxu0 %v610
    %622 = vmatprep.subr.bf16.mxu0 0
    %623 = vmatpush1.bf16.msra.mxu0 %v611
    %624 = vmatprep.subr.bf16.mxu0 0
    %625 = vmatpush1.bf16.msra.mxu0 0
    %626 = vmatprep.subr.bf16.mxu0 0
    %627 = vmatpush1.bf16.msra.mxu0 0
    %628 = vmatprep.subr.bf16.mxu0 0
    %629 = vmatpush1.bf16.msra.mxu0 0
    %630 = vmatprep.subr.bf16.mxu0 0
    %631 = vmatpush1.bf16.msra.mxu0 0
    %632 = vmatprep.subr.bf16.mxu0 0
    %633 = vmatpush1.bf16.msra.mxu0 0
    %634 = vmatprep.subr.bf16.mxu0 0
    %635 = vmatpush1.bf16.msra.mxu0 0
    %636 = vmatprep.subr.bf16.mxu0 0
    %637 = vmatpush1.bf16.msra.mxu0 0
    %638 = vmatprep.subr.bf16.mxu0 0
    %639 = vmatpush1.bf16.msra.mxu0 0
    %640 = vmatprep.subr.bf16.mxu0 0
    %641 = vmatpush1.bf16.msra.mxu0 0
    %642 = vmatprep.subr.bf16.mxu0 0
    %643 = vmatpush1.bf16.msra.mxu0 0
    %644 = vmatprep.subr.bf16.mxu0 0
    %645 = vmatpush1.bf16.msra.mxu0 0
    %646 = vmatprep.subr.bf16.mxu0 0
    %647 = vmatpush1.bf16.msra.mxu0 0
    %648 = vmatprep.subr.bf16.mxu0 0
    %649 = vmatpush1.bf16.msra.mxu0 0
    %650 = vmatprep.subr.bf16.mxu0 0
    %651 = vmatpush1.bf16.msra.mxu0 0
    %652 = vmatprep.mubr.bf16.mxu0 0
    %653 = vmatmul.mubr.bf16.gmra.mrb[0].mxu0 %v615
    %v654 = vpop.f32.mrb[0].mxu0
    %v655 = vadd.f32 %v601, %v654
    %v656 = vpop.f32.mrb[0].mxu0
    %v657 = vpop.f32.mrb[0].mxu0
    %v658 = vadd.f32 %v601, %v657
    %v659 = vpop.f32.mrb[0].mxu0
    %660 = vmatprep.mubr.bf16.mxu0 0
    %661 = vmatmul.mubr.bf16.gmra.mrb[0].mxu0 %v618
    %v662 = vpop.f32.mrb[0].mxu0
    %v663 = vadd.f32 %v601, %v662
    %v664 = vpop.f32.mrb[0].mxu0
    %v665 = vpop.f32.mrb[0].mxu0
    %v666 = vadd.f32 %v601, %v665
    %v667 = vpop.f32.mrb[0].mxu0
    %668 = vdwg.mxu0
    %v669 = vmax.f32 %v655, 0.0
    %v670 = vmax.f32 %v658, 0.0
    %v671 = vmax.f32 %v663, 0.0
    %v672 = vmax.f32 %v666, 0.0
    %v673 = vpack.c.bf16 %v670, %v669
    %v674 = vpack.c.bf16 %v672, %v671
    %675 = vmatprep.subr.bf16.mxu0 0
    %676 = vmatpush1.bf16.msra.mxu0 %v673
    %677 = vmatprep.subr.bf16.mxu0 0
    %678 = vmatpush1.bf16.msra.mxu0 %v674
    %679 = vmatprep.subr.bf16.mxu0 0
    %680 = vmatpush1.bf16.msra.mxu0 0
    %681 = vmatprep.subr.bf16.mxu0 0
    %682 = vmatpush1.bf16.msra.mxu0 0
    %683 = vmatprep.subr.bf16.mxu0 0
    %684 = vmatpush1.bf16.msra.mxu0 0
    %685 = vmatprep.subr.bf16.mxu0 0
    %686 = vmatpush1.bf16.msra.mxu0 0
    %687 = vmatprep.subr.bf16.mxu0 0
    %688 = vmatpush1.bf16.msra.mxu0 0
    %689 = vmatprep.subr.bf16.mxu0 0
    %690 = vmatpush1.bf16.msra.mxu0 0
    %691 = vmatprep.subr.bf16.mxu0 0
    %692 = vmatpush1.bf16.msra.mxu0 0
    %693 = vmatprep.subr.bf16.mxu0 0
    %694 = vmatpush1.bf16.msra.mxu0 0
    %695 = vmatprep.subr.bf16.mxu0 0
    %696 = vmatpush1.bf16.msra.mxu0 0
    %697 = vmatprep.subr.bf16.mxu0 0
    %698 = vmatpush1.bf16.msra.mxu0 0
    %699 = vmatprep.subr.bf16.mxu0 0
    %700 = vmatpush1.bf16.msra.mxu0 0
    %701 = vmatprep.subr.bf16.mxu0 0
    %702 = vmatpush1.bf16.msra.mxu0 0
    %703 = vmatprep.subr.bf16.mxu0 0
    %704 = vmatpush1.bf16.msra.mxu0 0
    %705 = vmatprep.subr.bf16.mxu0 0
    %706 = vmatpush1.bf16.msra.mxu0 0
    %707 = vmatprep.mubr.bf16.mxu0 0
    %708 = vmatmul.mubr.bf16.gmra.mrb[0].mxu0 %v225
    %v709 = vpop.f32.mrb[0].mxu0
    %v710 = vadd.f32 0.0, %v709
    %v711 = vpop.f32.mrb[0].mxu0
    %v712 = vpop.f32.mrb[0].mxu0
    %v713 = vadd.f32 0.0, %v712
    %v714 = vpop.f32.mrb[0].mxu0
    %715 = vmatprep.mubr.bf16.mxu0 0
    %716 = vmatmul.mubr.bf16.gmra.mrb[0].mxu0 %v228
    %v717 = vpop.f32.mrb[0].mxu0
    %v718 = vadd.f32 0.0, %v717
    %v719 = vpop.f32.mrb[0].mxu0
    %v720 = vpop.f32.mrb[0].mxu0
    %v721 = vadd.f32 0.0, %v720
    %v722 = vpop.f32.mrb[0].mxu0
    %723 = vmatprep.mubr.bf16.mxu0 0
    %724 = vmatmul.mubr.bf16.gmra.mrb[0].mxu0 %v231
    %v725 = vpop.f32.mrb[0].mxu0
    %v726 = vadd.f32 0.0, %v725
    %v727 = vpop.f32.mrb[0].mxu0
    %v728 = vpop.f32.mrb[0].mxu0
    %v729 = vadd.f32 0.0, %v728
    %v730 = vpop.f32.mrb[0].mxu0
    %731 = vdwg.mxu0
    %v732 = vpack.c.bf16 %v713, %v710
    %v733 = vpack.c.bf16 %v721, %v718
    %v734 = vld [vmem:[%s2 + $0x60] sm:$0xf]
    %v735 = vld [vmem:[%s2 + $0x64] sm:$0xf]
    %v736 = vld [vmem:[%s2 + $0x68] sm:$0xf]
    %v737 = vld [vmem:[%s2 + $0x6c] sm:$0xf]
    %v738 = vld [vmem:[%s2 + $0x70] sm:$0xf]
    %v739 = vld [vmem:[%s2 + $0x74] sm:$0xf]
    %v740 = vld [vmem:[%s2 + $0x78] sm:$0xf]
    %v741 = vld [vmem:[%s2 + $0x7c] sm:$0xf]
    %v742 = vlaneseq
    %v743 = vshrl.u32 %v742, 7
    %v744 = vsub.s32 3, %v743
    %v745 = vrot.slane %v31, %v744
    %v750 = vunpack.c.l.b16 %v734
    %v751 = vunpack.c.l.b16 %v735
    %v752 = vunpack.c.l.b16 %v736
    %v753 = vunpack.c.l.b16 %v737
    %v754 = vpack.c.b16 %v751, %v750
    %v755 = vpack.c.b16 %v753, %v752
    %v759 = vsel %vm70, %v732, 0
    %v762 = vsel %vm70, %v733, 0
    %764 = vmatprep.subr.bf16.mxu0 0
    %765 = vmatpush1.bf16.msra.mxu0 %v754
    %766 = vmatprep.subr.bf16.mxu0 0
    %767 = vmatpush1.bf16.msra.mxu0 %v755
    %768 = vmatprep.subr.bf16.mxu0 0
    %769 = vmatpush1.bf16.msra.mxu0 0
    %770 = vmatprep.subr.bf16.mxu0 0
    %771 = vmatpush1.bf16.msra.mxu0 0
    %772 = vmatprep.subr.bf16.mxu0 0
    %773 = vmatpush1.bf16.msra.mxu0 0
    %774 = vmatprep.subr.bf16.mxu0 0
    %775 = vmatpush1.bf16.msra.mxu0 0
    %776 = vmatprep.subr.bf16.mxu0 0
    %777 = vmatpush1.bf16.msra.mxu0 0
    %778 = vmatprep.subr.bf16.mxu0 0
    %779 = vmatpush1.bf16.msra.mxu0 0
    %780 = vmatprep.subr.bf16.mxu0 0
    %781 = vmatpush1.bf16.msra.mxu0 0
    %782 = vmatprep.subr.bf16.mxu0 0
    %783 = vmatpush1.bf16.msra.mxu0 0
    %784 = vmatprep.subr.bf16.mxu0 0
    %785 = vmatpush1.bf16.msra.mxu0 0
    %786 = vmatprep.subr.bf16.mxu0 0
    %787 = vmatpush1.bf16.msra.mxu0 0
    %788 = vmatprep.subr.bf16.mxu0 0
    %789 = vmatpush1.bf16.msra.mxu0 0
    %790 = vmatprep.subr.bf16.mxu0 0
    %791 = vmatpush1.bf16.msra.mxu0 0
    %792 = vmatprep.subr.bf16.mxu0 0
    %793 = vmatpush1.bf16.msra.mxu0 0
    %794 = vmatprep.subr.bf16.mxu0 0
    %795 = vmatpush1.bf16.msra.mxu0 0
    %796 = vmatprep.mubr.bf16.mxu0 0
    %797 = vmatmul.mubr.bf16.gmra.mrb[0].mxu0 %v759
    %v798 = vpop.f32.mrb[0].mxu0
    %v799 = vadd.f32 %v745, %v798
    %v800 = vpop.f32.mrb[0].mxu0
    %v801 = vpop.f32.mrb[0].mxu0
    %v802 = vadd.f32 %v745, %v801
    %v803 = vpop.f32.mrb[0].mxu0
    %804 = vmatprep.mubr.bf16.mxu0 0
    %805 = vmatmul.mubr.bf16.gmra.mrb[0].mxu0 %v762
    %v806 = vpop.f32.mrb[0].mxu0
    %v807 = vadd.f32 %v745, %v806
    %v808 = vpop.f32.mrb[0].mxu0
    %v809 = vpop.f32.mrb[0].mxu0
    %v810 = vadd.f32 %v745, %v809
    %v811 = vpop.f32.mrb[0].mxu0
    %812 = vdwg.mxu0
    %v813 = vmax.f32 %v799, 0.0
    %v814 = vmax.f32 %v802, 0.0
    %v815 = vmax.f32 %v807, 0.0
    %v816 = vmax.f32 %v810, 0.0
    %v817 = vpack.c.bf16 %v814, %v813
    %v818 = vpack.c.bf16 %v816, %v815
    %v819 = vlaneseq
    %v820 = vshrl.u32 %v819, 7
    %v821 = vsub.s32 7, %v820
    %v822 = vrot.slane %v31, %v821
    %v827 = vunpack.c.l.b16 %v738
    %v828 = vunpack.c.l.b16 %v739
    %v829 = vunpack.c.l.b16 %v740
    %v830 = vunpack.c.l.b16 %v741
    %v831 = vpack.c.b16 %v828, %v827
    %v832 = vpack.c.b16 %v830, %v829
    %v836 = vsel %vm70, %v817, 0
    %v839 = vsel %vm70, %v818, 0
    %841 = vmatprep.subr.bf16.mxu0 0
    %842 = vmatpush1.bf16.msra.mxu0 %v831
    %843 = vmatprep.subr.bf16.mxu0 0
    %844 = vmatpush1.bf16.msra.mxu0 %v832
    %845 = vmatprep.subr.bf16.mxu0 0
    %846 = vmatpush1.bf16.msra.mxu0 0
    %847 = vmatprep.subr.bf16.mxu0 0
    %848 = vmatpush1.bf16.msra.mxu0 0
    %849 = vmatprep.subr.bf16.mxu0 0
    %850 = vmatpush1.bf16.msra.mxu0 0
    %851 = vmatprep.subr.bf16.mxu0 0
    %852 = vmatpush1.bf16.msra.mxu0 0
    %853 = vmatprep.subr.bf16.mxu0 0
    %854 = vmatpush1.bf16.msra.mxu0 0
    %855 = vmatprep.subr.bf16.mxu0 0
    %856 = vmatpush1.bf16.msra.mxu0 0
    %857 = vmatprep.subr.bf16.mxu0 0
    %858 = vmatpush1.bf16.msra.mxu0 0
    %859 = vmatprep.subr.bf16.mxu0 0
    %860 = vmatpush1.bf16.msra.mxu0 0
    %861 = vmatprep.subr.bf16.mxu0 0
    %862 = vmatpush1.bf16.msra.mxu0 0
    %863 = vmatprep.subr.bf16.mxu0 0
    %864 = vmatpush1.bf16.msra.mxu0 0
    %865 = vmatprep.subr.bf16.mxu0 0
    %866 = vmatpush1.bf16.msra.mxu0 0
    %867 = vmatprep.subr.bf16.mxu0 0
    %868 = vmatpush1.bf16.msra.mxu0 0
    %869 = vmatprep.subr.bf16.mxu0 0
    %870 = vmatpush1.bf16.msra.mxu0 0
    %871 = vmatprep.subr.bf16.mxu0 0
    %872 = vmatpush1.bf16.msra.mxu0 0
    %873 = vmatprep.mubr.bf16.mxu0 0
    %874 = vmatmul.mubr.bf16.gmra.mrb[0].mxu0 %v836
    %v875 = vpop.f32.mrb[0].mxu0
    %v876 = vadd.f32 %v822, %v875
    %v877 = vpop.f32.mrb[0].mxu0
    %v878 = vpop.f32.mrb[0].mxu0
    %v879 = vadd.f32 %v822, %v878
    %v880 = vpop.f32.mrb[0].mxu0
    %881 = vmatprep.mubr.bf16.mxu0 0
    %882 = vmatmul.mubr.bf16.gmra.mrb[0].mxu0 %v839
    %v883 = vpop.f32.mrb[0].mxu0
    %v884 = vadd.f32 %v822, %v883
    %v885 = vpop.f32.mrb[0].mxu0
    %v886 = vpop.f32.mrb[0].mxu0
    %v887 = vadd.f32 %v822, %v886
    %v888 = vpop.f32.mrb[0].mxu0
    %889 = vdwg.mxu0
    %v890 = vmax.f32 %v876, 0.0
    %v891 = vmax.f32 %v879, 0.0
    %v892 = vmax.f32 %v884, 0.0
    %v893 = vmax.f32 %v887, 0.0
    %v894 = vpack.c.bf16 %v891, %v890
    %v895 = vpack.c.bf16 %v893, %v892
    %896 = vmatprep.subr.bf16.mxu0 0
    %897 = vmatpush1.bf16.msra.mxu0 %v894
    %898 = vmatprep.subr.bf16.mxu0 0
    %899 = vmatpush1.bf16.msra.mxu0 %v895
    %900 = vmatprep.subr.bf16.mxu0 0
    %901 = vmatpush1.bf16.msra.mxu0 0
    %902 = vmatprep.subr.bf16.mxu0 0
    %903 = vmatpush1.bf16.msra.mxu0 0
    %904 = vmatprep.subr.bf16.mxu0 0
    %905 = vmatpush1.bf16.msra.mxu0 0
    %906 = vmatprep.subr.bf16.mxu0 0
    %907 = vmatpush1.bf16.msra.mxu0 0
    %908 = vmatprep.subr.bf16.mxu0 0
    %909 = vmatpush1.bf16.msra.mxu0 0
    %910 = vmatprep.subr.bf16.mxu0 0
    %911 = vmatpush1.bf16.msra.mxu0 0
    %912 = vmatprep.subr.bf16.mxu0 0
    %913 = vmatpush1.bf16.msra.mxu0 0
    %914 = vmatprep.subr.bf16.mxu0 0
    %915 = vmatpush1.bf16.msra.mxu0 0
    %916 = vmatprep.subr.bf16.mxu0 0
    %917 = vmatpush1.bf16.msra.mxu0 0
    %918 = vmatprep.subr.bf16.mxu0 0
    %919 = vmatpush1.bf16.msra.mxu0 0
    %920 = vmatprep.subr.bf16.mxu0 0
    %921 = vmatpush1.bf16.msra.mxu0 0
    %922 = vmatprep.subr.bf16.mxu0 0
    %923 = vmatpush1.bf16.msra.mxu0 0
    %924 = vmatprep.subr.bf16.mxu0 0
    %925 = vmatpush1.bf16.msra.mxu0 0
    %926 = vmatprep.subr.bf16.mxu0 0
    %927 = vmatpush1.bf16.msra.mxu0 0
    %928 = vmatprep.mubr.bf16.mxu0 0
    %929 = vmatmul.mubr.bf16.gmra.mrb[0].mxu0 %v225
    %v930 = vpop.f32.mrb[0].mxu0
    %v931 = vpop.f32.mrb[0].mxu0
    %v932 = vpop.f32.mrb[0].mxu0
    %v933 = vpop.f32.mrb[0].mxu0
    %934 = vmatprep.mubr.bf16.mxu0 0
    %935 = vmatmul.mubr.bf16.gmra.mrb[0].mxu0 %v228
    %v936 = vpop.f32.mrb[0].mxu0
    %v937 = vpop.f32.mrb[0].mxu0
    %v938 = vpop.f32.mrb[0].mxu0
    %v939 = vpop.f32.mrb[0].mxu0
    %940 = vmatprep.mubr.bf16.mxu0 0
    %941 = vmatmul.mubr.bf16.gmra.mrb[0].mxu0 %v231
    %v942 = vpop.f32.mrb[0].mxu0
    %v943 = vadd.f32 0.0, %v942
    %v944 = vpop.f32.mrb[0].mxu0
    %v945 = vpop.f32.mrb[0].mxu0
    %v946 = vadd.f32 0.0, %v945
    %v947 = vpop.f32.mrb[0].mxu0
    %948 = vdwg.mxu0
    %951 = vrot.lane.b32.xlu0 %v505, 32
    %v952 = vpop.permute.xlu0 %951
    %953 = vrot.lane.b32.xlu0 %v508, 32
    %v954 = vpop.permute.xlu0 %953
    %959 = vrot.lane.b32.xlu0 %v726, 64
    %v960 = vpop.permute.xlu0 %959
    %961 = vrot.lane.b32.xlu0 %v729, 64
    %v962 = vpop.permute.xlu0 %961
    %967 = vrot.lane.b32.xlu0 %v943, 96
    %v968 = vpop.permute.xlu0 %967
    %969 = vrot.lane.b32.xlu0 %v946, 96
    %v970 = vpop.permute.xlu0 %969
    %v973 = vsel %vm70, %v284, %v952
    %v974 = vsel %vm70, %v287, %v954
    %vm975 = vcmask 523264
    %v976 = vsel %vm975, %v973, %v960
    %v977 = vsel %vm975, %v974, %v962
    %vm978 = vcmask 785408
    %v979 = vsel %vm978, %v976, %v968
    %v980 = vsel %vm978, %v977, %v970
    %v981 = vpack.c.bf16 %v980, %v979
    %v982 = vld [vmem:[%s4] sm:$0xf]
    %v983 = vld [vmem:[%s4 + $0x4] sm:$0xf]
    %v984 = vld [vmem:[%s4 + $0x8] sm:$0xf]
    %v985 = vld [vmem:[%s4 + $0xc] sm:$0xf]
    %v986 = vld [vmem:[%s4 + $0x10] sm:$0xf]
    %v987 = vld [vmem:[%s4 + $0x14] sm:$0xf]
    %v988 = vld [vmem:[%s4 + $0x18] sm:$0xf]
    %v989 = vld [vmem:[%s4 + $0x1c] sm:$0xf]
    %v990 = vld [vmem:[%s4 + $0x20] sm:$0xf]
    %v991 = vld [vmem:[%s4 + $0x24] sm:$0xf]
    %v992 = vld [vmem:[%s4 + $0x28] sm:$0xf]
    %v993 = vld [vmem:[%s4 + $0x2c] sm:$0xf]
    %v994 = vld [vmem:[%s4 + $0x30] sm:$0xf]
    %v995 = vld [vmem:[%s4 + $0x34] sm:$0xf]
    %v996 = vld [vmem:[%s4 + $0x38] sm:$0xf]
    %v997 = vld [vmem:[%s4 + $0x3c] sm:$0xf]
    %v1014 = vunpack.c.l.b16 %v982
    %v1015 = vunpack.c.l.b16 %v983
    %v1016 = vunpack.c.l.b16 %v984
    %v1017 = vunpack.c.l.b16 %v985
    %v1018 = vunpack.c.l.b16 %v986
    %v1019 = vunpack.c.l.b16 %v987
    %v1020 = vunpack.c.l.b16 %v988
    %v1021 = vunpack.c.l.b16 %v989
    %v1022 = vunpack.c.l.b16 %v990
    %v1023 = vunpack.c.l.b16 %v991
    %v1024 = vunpack.c.l.b16 %v992
    %v1025 = vunpack.c.l.b16 %v993
    %v1026 = vunpack.c.l.b16 %v994
    %v1027 = vunpack.c.l.b16 %v995
    %v1028 = vunpack.c.l.b16 %v996
    %v1029 = vunpack.c.l.b16 %v997
    %v1030 = vpack.c.b16 %v1015, %v1014
    %v1031 = vpack.c.b16 %v1017, %v1016
    %v1032 = vpack.c.b16 %v1019, %v1018
    %v1033 = vpack.c.b16 %v1021, %v1020
    %v1034 = vpack.c.b16 %v1023, %v1022
    %v1035 = vpack.c.b16 %v1025, %v1024
    %v1036 = vpack.c.b16 %v1027, %v1026
    %v1037 = vpack.c.b16 %v1029, %v1028
    %1046 = vmatprep.subr.bf16.mxu0 0
    %1047 = vmatpush1.bf16.msra.mxu0 %v1030
    %1048 = vmatprep.subr.bf16.mxu0 0
    %1049 = vmatpush1.bf16.msra.mxu0 %v1031
    %1050 = vmatprep.subr.bf16.mxu0 0
    %1051 = vmatpush1.bf16.msra.mxu0 %v1032
    %1052 = vmatprep.subr.bf16.mxu0 0
    %1053 = vmatpush1.bf16.msra.mxu0 %v1033
    %1054 = vmatprep.subr.bf16.mxu0 0
    %1055 = vmatpush1.bf16.msra.mxu0 %v1034
    %1056 = vmatprep.subr.bf16.mxu0 0
    %1057 = vmatpush1.bf16.msra.mxu0 %v1035
    %1058 = vmatprep.subr.bf16.mxu0 0
    %1059 = vmatpush1.bf16.msra.mxu0 %v1036
    %1060 = vmatprep.subr.bf16.mxu0 0
    %1061 = vmatpush1.bf16.msra.mxu0 %v1037
    %1062 = vmatprep.subr.bf16.mxu0 0
    %1063 = vmatpush1.bf16.msra.mxu0 0
    %1064 = vmatprep.subr.bf16.mxu0 0
    %1065 = vmatpush1.bf16.msra.mxu0 0
    %1066 = vmatprep.subr.bf16.mxu0 0
    %1067 = vmatpush1.bf16.msra.mxu0 0
    %1068 = vmatprep.subr.bf16.mxu0 0
    %1069 = vmatpush1.bf16.msra.mxu0 0
    %1070 = vmatprep.subr.bf16.mxu0 0
    %1071 = vmatpush1.bf16.msra.mxu0 0
    %1072 = vmatprep.subr.bf16.mxu0 0
    %1073 = vmatpush1.bf16.msra.mxu0 0
    %1074 = vmatprep.subr.bf16.mxu0 0
    %1075 = vmatpush1.bf16.msra.mxu0 0
    %1076 = vmatprep.subr.bf16.mxu0 0
    %1077 = vmatpush1.bf16.msra.mxu0 0
    %1078 = vmatprep.mubr.bf16.mxu0 0
    %1079 = vmatmul.mubr.bf16.gmra.mrb[0].mxu0 %v981
    %v1080 = vpop.f32.mrb[0].mxu0
    %v1081 = vadd.f32 0.0, %v1080
    %v1082 = vpop.f32.mrb[0].mxu0
    %v1083 = vpop.f32.mrb[0].mxu0
    %v1084 = vpop.f32.mrb[0].mxu0
    %1085 = vdwg.mxu0
    %v1086 = vld [vmem:[%s5] sm:$0xf]
    %v1087 = vadd.f32 %v1081, %v1086
    %vm1088 = vcmask 60416
    %1089 = vst.msk [vmem:[#allocation2] sm:$0xf] %vm1088, %v1087
    // Predicated region
    $region26: #{tpu_custom_call.1} parent=1 // pred_check
      _
    $region27: #{tpu_custom_call.1} parent=1 // pred_check_branch
      %1091 = sbr.rel (0) target = $region29
    $region28: #{tpu_custom_call.1} parent=1 // pred_region
      %s1093 = ssub.s32 64, 64
      %1094 = vsyncadd [#allocation3], %s1093
      %s1096 = sshll.u32 [#allocation2], 4
      %s1097 = int_to_ptr.vmem [resolvable:$true] %s1096
      %1099 = dma.vmem_to_hbm [thread:$0]  %s1097, 64, %s6, [#allocation3]
    $region29: #{tpu_custom_call.1} parent=1 // pred_fallthru
      _
    // Predicated region
    $region30: #{tpu_custom_call.1} parent=1 // pred_check
      _
    $region31: #{tpu_custom_call.1} parent=1 // pred_check_branch
      %1101 = sbr.rel (0) target = $region33
    $region32: #{tpu_custom_call.1} parent=1 // pred_region
      %1102 = dma.done [#allocation3], 64
    $region33: #{tpu_custom_call.1} parent=1 // pred_fallthru
      _
    %1103 = vsyncpa [#allocation3], 1

</llo_original>
